<compile_context>
chip_gen: v7x
topology: tpu7x:2x2x1
jax: 0.10.0
libtpu: 0.0.40
codegen_flags: <defaults>
</compile_context>

<pallas_src>
import jax
import jax.numpy as jnp
from jax.experimental import pallas as pl
from jax.experimental.pallas import tpu as pltpu


def sigmoid_linear_kernel(x_ref, w2_ref, b2_ref, out_ref):
    """out = sigmoid(x @ w2^T + b2) for one batch tile.

    x_ref  : (TB, D) f32 VMEM -- batch tile, features on the lane axis
    w2_ref : (1, D)  f32 VMEM -- linear2 weight as a lane-dense row
    b2_ref : (1,)    f32 SMEM -- linear2 bias scalar
    out_ref: (TB, 1) f32 VMEM -- sigmoid(per-row logit)
    """
    # VPU multiply (w2 row broadcasts over sublanes) + XLU lane reduce over D;
    # no MXU push/pop needed for an N=1 matmul.  At scale this kernel is
    # HBM-read bound (~128 B in per 4 B out), so the compute-unit choice is
    # irrelevant; DMA shape / tile size are the only levers.
    z = jnp.sum(x_ref[...] * w2_ref[...], axis=-1, keepdims=True)  # (TB, 1)
    # EUP sigmoid (separate bundle slot -> effectively free vs. the DMA).
    out_ref[...] = jax.nn.sigmoid(z + b2_ref[0]).astype(out_ref.dtype)


def neural_network_forward(x, w2, b2, *, tb=2048):
    """x: (B, D) f32; w2: (1, D) f32; b2: (1,) f32  ->  (B, 1) f32."""
    B, D = x.shape
    # The reference forward() applies linear2 directly to x, so linear2's
    # in_features must equal x's feature dim (i.e. input_size == hidden_size).
    assert w2.shape == (1, D), (
        f"linear2 in_features ({w2.shape[1]}) must equal input feature dim "
        f"({D}); the reference forward() requires input_size == hidden_size")
    assert b2.shape == (1,)
    x = x.astype(jnp.float32)
    w2 = w2.astype(jnp.float32)
    b2 = b2.astype(jnp.float32)

    vmem = pl.BlockSpec(memory_space=pltpu.MemorySpace.VMEM)
    smem = pl.BlockSpec(memory_space=pltpu.MemorySpace.SMEM)

    if B <= tb:
        # Small batch: gridless, whole arrays resident in VMEM.  At 8x32 the
        # call is fixed overhead; nothing inside the kernel matters.
        return pl.pallas_call(
            sigmoid_linear_kernel,
            out_shape=jax.ShapeDtypeStruct((B, 1), jnp.float32),
            in_specs=[vmem, vmem, smem],
            out_specs=vmem,
        )(x, w2, b2)

    # Large batch: tile the batch (sublane) axis; one clean streaming read of
    # x, weight row + bias stay resident.  "parallel" lets v7x's two
    # TensorCores split the batch axis (no-op on single-TC v5e/v6e).
    assert tb % 8 == 0, "batch tile must be a sublane multiple"
    grid = (pl.cdiv(B, tb),)
    return pl.pallas_call(
        sigmoid_linear_kernel,
        out_shape=jax.ShapeDtypeStruct((B, 1), jnp.float32),
        grid_spec=pltpu.PrefetchScalarGridSpec(
            num_scalar_prefetch=0,
            grid=grid,
            in_specs=[
                pl.BlockSpec((tb, D), lambda i: (i, 0)),
                pl.BlockSpec((1, D), lambda i: (0, 0)),
                pl.BlockSpec(memory_space=pltpu.MemorySpace.SMEM),
            ],
            out_specs=pl.BlockSpec((tb, 1), lambda i: (i, 0)),
        ),
        compiler_params=pltpu.CompilerParams(
            dimension_semantics=("parallel",)),
    )(x, w2, b2)


def init_params(key, input_size, hidden_size):
    """Mimic nn.Linear's U(-1/sqrt(fan_in), 1/sqrt(fan_in)) init.

    linear1's parameters (w1, b1) mirror the module but are dead in the
    reference forward() and are never passed to the kernel.
    """
    k1, k2, k3, k4 = jax.random.split(key, 4)
    bound1 = 1.0 / jnp.sqrt(input_size)
    bound2 = 1.0 / jnp.sqrt(hidden_size)
    w1 = jax.random.uniform(k1, (input_size, hidden_size), jnp.float32, -bound1, bound1)
    b1 = jax.random.uniform(k2, (1, hidden_size), jnp.float32, -bound1, bound1)
    # linear2 weight stored as a lane-dense (1, in_features) row for the kernel.
    w2 = jax.random.uniform(k3, (1, hidden_size), jnp.float32, -bound2, bound2)
    b2 = jax.random.uniform(k4, (1,), jnp.float32, -bound2, bound2)
    return w1, b1, w2, b2


if __name__ == "__main__":
    batch = 8
    input_size = 32
    hidden_size = 32  # reference forward() applies linear2 to x, so these must match

    key = jax.random.PRNGKey(0)
    kx, kp, kx2 = jax.random.split(key, 3)
    x = jax.random.normal(kx, (batch, input_size), jnp.float32)
    w1, b1, w2, b2 = init_params(kp, input_size, hidden_size)
    del w1, b1  # dead per the reference forward(); never touched by the kernel

    # --- small-batch (gridless) path ---
    out = neural_network_forward(x, w2, b2)
    jax.block_until_ready(out)
    ref = jax.nn.sigmoid(x @ w2.T + b2)
    assert out.shape == (batch, 1)
    assert jnp.allclose(out, ref, atol=1e-5), "mismatch vs reference (small batch)"

    # --- tiled (grid) path, exercised at a modest size with a small tile ---
    big_batch = 256
    x_big = jax.random.normal(kx2, (big_batch, input_size), jnp.float32)
    out_big = neural_network_forward(x_big, w2, b2, tb=128)
    jax.block_until_ready(out_big)
    ref_big = jax.nn.sigmoid(x_big @ w2.T + b2)
    assert out_big.shape == (big_batch, 1)
    assert jnp.allclose(out_big, ref_big, atol=1e-5), "mismatch vs reference (tiled)"

    print("KERNEL_OK")
</pallas_src>

<mosaic_0001>
module attributes {stable_mosaic.version = 11 : i64} {
  func.func @sigmoid_linear_kernel(%arg0: memref<8x32xf32, #tpu.memory_space<vmem>>, %arg1: memref<1x32xf32, #tpu.memory_space<vmem>>, %arg2: memref<1xf32, #tpu.memory_space<smem>>, %arg3: memref<8x1xf32, #tpu.memory_space<vmem>>) attributes {dimension_semantics = [], scalar_prefetch = 0 : i64, scratch_operands = 0 : i64, tpu.core_type = #tpu.core_type<tc>} {
    %c0 = arith.constant 0 : index
    %c0_0 = arith.constant 0 : index
    %0 = vector.load %arg0[%c0, %c0_0] : memref<8x32xf32, #tpu.memory_space<vmem>>, vector<8x32xf32>
    %c0_1 = arith.constant 0 : index
    %c0_2 = arith.constant 0 : index
    %1 = vector.load %arg1[%c0_1, %c0_2] : memref<1x32xf32, #tpu.memory_space<vmem>>, vector<1x32xf32>
    %2 = vector.broadcast %1 : vector<1x32xf32> to vector<8x32xf32>
    %3 = arith.mulf %0, %2 : vector<8x32xf32>
    %cst = arith.constant dense<0.000000e+00> : vector<8xf32>
    %4 = vector.multi_reduction <add>, %3, %cst [1] : vector<8x32xf32> to vector<8xf32>
    %5 = vector.shape_cast %4 : vector<8xf32> to vector<8x1xf32>
    %c0_3 = arith.constant 0 : index
    %6 = memref.load %arg2[%c0_3] : memref<1xf32, #tpu.memory_space<smem>>
    %7 = vector.broadcast %6 : f32 to vector<8x1xf32>
    %8 = arith.addf %5, %7 : vector<8x1xf32>
    %9 = arith.negf %8 : vector<8x1xf32>
    %10 = math.exp %9 : vector<8x1xf32>
    %cst_4 = arith.constant 1.000000e+00 : f32
    %11 = vector.broadcast %cst_4 : f32 to vector<8x1xf32>
    %12 = arith.addf %11, %10 : vector<8x1xf32>
    %13 = arith.divf %11, %12 : vector<8x1xf32>
    %c0_5 = arith.constant 0 : index
    %c0_6 = arith.constant 0 : index
    %14 = vector.load %arg3[%c0_5, %c0_6] : memref<8x1xf32, #tpu.memory_space<vmem>>, vector<8x1xf32>
    tpu.vector_store %arg3[%c0_5, %c0_6], %13 {strides = array<i32>} : memref<8x1xf32, #tpu.memory_space<vmem>>, vector<8x1xf32>,
    return
  }
}

</mosaic_0001>

<llo_original>
// kernel: tpu_custom_call.1
$region0: #{tpu_custom_call.1}
  #allocation0 [shape = 'u32[]', space=smem, size = 0x4, offset = 0x4, fixed_abs, tag = 'smem constant byte address 0x4 - core index']
  #allocation1 [shape = 'u32[144,128]{1,0:T(1,128)}', space=vmem, size = 0x12000, scoped, tag = 'internal scratch']
  #allocation2 [shape = 'f32[1]{0:T(128)S(6)}', space=smem, size = 0x200, scoped, tag = 'scoped memory for tpu_custom_call.1']
  %s0 = inlined_call_operand.hbm [shape: f32[8,32], index: 0, kind: input, shape index: {}]
  %s1 = inlined_call_operand.vmem [shape: f32[1,32], index: 1, kind: input, shape index: {}]
  %s2 = inlined_call_operand.<no memory space> [shape: f32[1], index: 2, kind: input, shape index: {}]
  %s3 = inlined_call_operand.vmem [shape: f32[8,1], index: 3, kind: output, shape index: {}]
  %s4 = sld [smem:[#allocation0]]
  $region26: #{tpu_custom_call.1} parent=0
    _
  %s6 = ssub.s32 1, %s4
  %s7 = scalar_select 0, %s6, %s4
  %8 = sst [smem:[#allocation2]] %s2
  $region1: #{tpu_custom_call.1} parent=0
    #allocation3 [shape = 'u8[4096]{0}', space=vmem, size = 0x1000, scoped, tag = 'input window, operand 0, single buffered']
    #allocation4 [shape = 's32[1]{0}', space=sflag, size = 0x4, scoped, tag = 'scoped memory for tpu_custom_call.1']
    %9 = vsyncpa [#allocation4], 0
    // Predicated region
    $region2: #{tpu_custom_call.1} parent=1 // pred_check
      _
    $region3: #{tpu_custom_call.1} parent=1 // pred_check_branch
      %11 = sbr.rel (0) target = $region5
    $region4: #{tpu_custom_call.1} parent=1 // pred_region
      %s13 = ssub.s32 128, 128
      %14 = vsyncadd [#allocation4], %s13
      %s16 = sshll.u32 [#allocation3], 4
      %s17 = int_to_ptr.vmem [resolvable:$true] %s16
      %19 = dma.hbm_to_vmem [thread:$0]  %s0, 128, %s17, [#allocation4]
    $region5: #{tpu_custom_call.1} parent=1 // pred_fallthru
      _
    // Predicated region
    $region6: #{tpu_custom_call.1} parent=1 // pred_check
      _
    $region7: #{tpu_custom_call.1} parent=1 // pred_check_branch
      %21 = sbr.rel (0) target = $region9
    $region8: #{tpu_custom_call.1} parent=1 // pred_region
      _
    $region9: #{tpu_custom_call.1} parent=1 // pred_fallthru
      _
    // Predicated region
    $region10: #{tpu_custom_call.1} parent=1 // pred_check
      _
    $region11: #{tpu_custom_call.1} parent=1 // pred_check_branch
      %23 = sbr.rel (0) target = $region13
    $region12: #{tpu_custom_call.1} parent=1 // pred_region
      _
    $region13: #{tpu_custom_call.1} parent=1 // pred_fallthru
      _
    // Predicated region
    $region14: #{tpu_custom_call.1} parent=1 // pred_check
      _
    $region15: #{tpu_custom_call.1} parent=1 // pred_check_branch
      %25 = sbr.rel (0) target = $region17
    $region16: #{tpu_custom_call.1} parent=1 // pred_region
      %26 = dma.done [#allocation4], 128
    $region17: #{tpu_custom_call.1} parent=1 // pred_fallthru
      _
    %v27 = vld [vmem:[#allocation3] sm:$0xff]
    %v28 = vld [vmem:[%s1] sm:$0x1]
    %v30 = vlaneseq
    %v31 = vshrl.u32 %v30, 7
    %v32 = vsub.s32 0, %v31
    %v33 = vrot.slane %v28, %v32
    %v35 = vmul.f32 %v27, %v33
    %vm36 = vcmask 261120
    %v37 = vsel %vm36, %v35, 0.0
    %38 = vadd.xlane.f32.xlu0 %v37
    %v39 = vpop.xlane.xlu0 %38
    %s40 = sld [smem:[#allocation2]]
    %v41 = vstv %s40
    %v42 = vadd.f32 %v39, %v41
    %v43 = vxor.u32 %v42, 2147483648
    %v44 = vmul.f32 %v43, 1.442695
    %v45 = vpow.pop %v44
    %v46 = vadd.f32 %v45, 1.0
    %v47 = vrcp.pop %v46
    %v48 = vmul.f32 1.0, %v47
    %vm49 = vcmask 7168
    %50 = vst.msk [vmem:[%s3] sm:$0xff] %vm49, %v48
    // Predicated region
    $region18: #{tpu_custom_call.1} parent=1 // pred_check
      _
    $region19: #{tpu_custom_call.1} parent=1 // pred_check_branch
      %52 = sbr.rel (0) target = $region21
    $region20: #{tpu_custom_call.1} parent=1 // pred_region
      _
    $region21: #{tpu_custom_call.1} parent=1 // pred_fallthru
      _
    // Predicated region
    $region22: #{tpu_custom_call.1} parent=1 // pred_check
      _
    $region23: #{tpu_custom_call.1} parent=1 // pred_check_branch
      %54 = sbr.rel (0) target = $region25
    $region24: #{tpu_custom_call.1} parent=1 // pred_region
      _
    $region25: #{tpu_custom_call.1} parent=1 // pred_fallthru
      _
    %55 = vsyncpa [#allocation4], 1

</llo_original>
